<compile_context>
chip_gen: v5e
topology: v5e:2x2
jax: 0.10.0
libtpu: 0.0.40
codegen_flags: <defaults>
</compile_context>

<pallas_src>
import functools

import jax
import jax.numpy as jnp
from jax.experimental import pallas as pl
from jax.experimental.pallas import tpu as pltpu


_DEFAULT_TILE_ROWS = 1024        # rows of `pred` streamed per grid step
_DEFAULT_NUM_CHUNKS = 2          # leading 'parallel' axis (2 TCs on v7x)
_MIN_KERNEL_ELEMENTS = 1 << 16   # below this the launch overhead dominates


def _round_up(x, m):
    return (x + m - 1) // m * m


def _nll_loss_ref(pred, target):
    """Pure-JAX reference / small-input fallback."""
    picked = jnp.take_along_axis(
        pred.astype(jnp.float32), target.astype(jnp.int32)[:, None], axis=1)
    return -jnp.mean(picked)


def _nll_partial_sum_kernel(pred_ref, tgt_ref, out_ref, *, n_rows, tile_rows,
                            blocks_per_chunk):
    """Accumulates sum_i pred[i, target[i]] over this chunk's rows into out_ref."""
    p = pl.program_id(0)   # parallel chunk (one per TensorCore on v7x)
    i = pl.program_id(1)   # sequential reduction step within the chunk

    @pl.when(i == 0)
    def _init():
        out_ref[...] = jnp.zeros_like(out_ref)

    pred = pred_ref[...].astype(jnp.float32)      # (tile_rows, C); bf16 cast is per-tile
    tgt = tgt_ref[...]                            # (tile_rows, 1) int32

    tn, c = pred.shape
    row_ids = jax.lax.broadcasted_iota(jnp.int32, (tn, c), 0)
    col_ids = jax.lax.broadcasted_iota(jnp.int32, (tn, c), 1)

    # Logical (unclamped) global row of each block row; rows past n_rows
    # (tail padding / fully out-of-range trailing blocks) contribute nothing.
    base = (p * blocks_per_chunk + i) * tile_rows
    valid = (base + row_ids < n_rows) & (col_ids == tgt)

    picked = jnp.where(valid, pred, jnp.float32(0.0))   # select, no onehot multiply
    out_ref[...] += jnp.sum(picked)                     # scalar broadcast into (1,8,128)


def _nll_loss_pallas(pred, target, *, tile_rows, num_chunks):
    n, c = pred.shape
    target2d = target.astype(jnp.int32).reshape(n, 1)

    tile_rows = min(tile_rows, _round_up(n, 8))
    total_blocks = pl.cdiv(n, tile_rows)
    num_chunks = max(1, min(num_chunks, total_blocks))
    blocks_per_chunk = pl.cdiv(total_blocks, num_chunks)

    kernel = functools.partial(
        _nll_partial_sum_kernel,
        n_rows=n, tile_rows=tile_rows, blocks_per_chunk=blocks_per_chunk)

    # Clamp the logical block index so a (fully masked-out) trailing block of
    # the last chunk never issues a DMA from fully out-of-range HBM.
    def _row_block(pi, ii):
        return jnp.minimum(pi * blocks_per_chunk + ii, total_blocks - 1)

    partials = pl.pallas_call(
        kernel,
        out_shape=jax.ShapeDtypeStruct((num_chunks, 8, 128), jnp.float32),
        grid_spec=pltpu.PrefetchScalarGridSpec(
            num_scalar_prefetch=0,
            grid=(num_chunks, blocks_per_chunk),
            in_specs=[
                pl.BlockSpec((tile_rows, c), lambda pi, ii: (_row_block(pi, ii), 0)),
                pl.BlockSpec((tile_rows, 1), lambda pi, ii: (_row_block(pi, ii), 0)),
            ],
            out_specs=pl.BlockSpec((1, 8, 128), lambda pi, ii: (pi, 0, 0)),
        ),
        compiler_params=pltpu.CompilerParams(
            dimension_semantics=("parallel", "arbitrary")),
    )(pred, target2d)

    # Combine per-chunk partial sums; apply the mean-NLL scale exactly once.
    return -jnp.sum(partials[:, 0, 0]) / jnp.float32(n)


def get_loss(pred, target, trans_feat=None, *, force_kernel=False,
             tile_rows=_DEFAULT_TILE_ROWS, num_chunks=_DEFAULT_NUM_CHUNKS):
    """NLL loss (mean reduction), matching `F.nll_loss(pred, target)`.

    pred:       (N, C) log-probabilities (f32 or bf16)
    target:     (N,)   integer class indices (assumed valid)
    trans_feat: ignored, kept for signature parity with the PyTorch module.
    """
    del trans_feat  # unused by the loss, same as the reference module
    n, c = pred.shape
    if not force_kernel and n * c < _MIN_KERNEL_ELEMENTS:
        return _nll_loss_ref(pred, target)
    return _nll_loss_pallas(pred, target, tile_rows=tile_rows,
                            num_chunks=num_chunks)


if __name__ == "__main__":
    key = jax.random.PRNGKey(0)
    k1, k2, k3, k4 = jax.random.split(key, 4)

    trans_feat = jnp.zeros((2, 4, 4), jnp.float32)  # unused by the loss

    # Case 1: tiny shapes, force the Pallas kernel path to exercise it on TPU.
    N1, C1 = 8, 16
    pred1 = jax.nn.log_softmax(
        jax.random.normal(k1, (N1, C1), dtype=jnp.float32), axis=-1)
    tgt1 = jax.random.randint(k2, (N1,), 0, C1, dtype=jnp.int32)
    loss1 = get_loss(pred1, tgt1, trans_feat, force_kernel=True)
    jax.block_until_ready(loss1)
    ref1 = _nll_loss_ref(pred1, tgt1)
    assert jnp.allclose(loss1, ref1, atol=1e-6, rtol=1e-6), (loss1, ref1)

    # Case 2: multi-tile case exercising pipelined streaming, tail masking and
    # the 2-chunk (per-TensorCore) partial-sum split.
    N2, C2 = 2088, 50
    pred2 = jax.nn.log_softmax(
        jax.random.normal(k3, (N2, C2), dtype=jnp.float32), axis=-1)
    tgt2 = jax.random.randint(k4, (N2,), 0, C2, dtype=jnp.int32)
    loss2 = get_loss(pred2, tgt2, trans_feat)
    jax.block_until_ready(loss2)
    ref2 = _nll_loss_ref(pred2, tgt2)
    assert jnp.allclose(loss2, ref2, atol=1e-5, rtol=1e-5), (loss2, ref2)

    print("KERNEL_OK")
</pallas_src>

<mosaic_0001>
module attributes {stable_mosaic.version = 11 : i64} {
  func.func @_nll_partial_sum_kernel(%arg0: i32, %arg1: i32, %arg2: memref<8x16xf32, #tpu.memory_space<vmem>>, %arg3: memref<8x1xi32, #tpu.memory_space<vmem>>, %arg4: memref<1x8x128xf32, #tpu.memory_space<vmem>>) attributes {dimension_semantics = [#tpu.dimension_semantics<parallel>, #tpu.dimension_semantics<arbitrary>], iteration_bounds = array<i64: 1, 1>, scalar_prefetch = 0 : i64, scratch_operands = 0 : i64, tpu.core_type = #tpu.core_type<tc>, window_params = [{transform_indices = @transform_0, window_bounds = array<i64: 8, 16>}, {transform_indices = @transform_1, window_bounds = array<i64: 8, 1>}, {transform_indices = @transform_2, window_bounds = array<i64: 1, 8, 128>}]} {
    %c0_i32 = arith.constant 0 : i32
    %0 = arith.cmpi eq, %arg1, %c0_i32 : i32
    %1 = arith.extui %0 : i1 to i32
    %c0_i32_0 = arith.constant 0 : i32
    %2 = arith.cmpi ne, %1, %c0_i32_0 : i32
    scf.if %2 {
      %cst_12 = arith.constant 0.000000e+00 : f32
      %27 = vector.broadcast %cst_12 : f32 to vector<1x8x128xf32>
      %c0_13 = arith.constant 0 : index
      %c0_14 = arith.constant 0 : index
      %c0_15 = arith.constant 0 : index
      %28 = vector.load %arg4[%c0_13, %c0_14, %c0_15] : memref<1x8x128xf32, #tpu.memory_space<vmem>>, vector<1x8x128xf32>
      tpu.vector_store %arg4[%c0_13, %c0_14, %c0_15], %27 {strides = array<i32>} : memref<1x8x128xf32, #tpu.memory_space<vmem>>, vector<1x8x128xf32>,
    } else {
    }
    %c0 = arith.constant 0 : index
    %c0_1 = arith.constant 0 : index
    %3 = vector.load %arg2[%c0, %c0_1] : memref<8x16xf32, #tpu.memory_space<vmem>>, vector<8x16xf32>
    %c0_2 = arith.constant 0 : index
    %c0_3 = arith.constant 0 : index
    %4 = vector.load %arg3[%c0_2, %c0_3] : memref<8x1xi32, #tpu.memory_space<vmem>>, vector<8x1xi32>
    %5 = tpu.iota {dimensions = array<i32: 0>} : vector<8x16xi32>
    %6 = tpu.iota {dimensions = array<i32: 1>} : vector<8x16xi32>
    %c1_i32 = arith.constant 1 : i32
    %7 = arith.muli %arg0, %c1_i32 : i32
    %8 = arith.addi %7, %arg1 : i32
    %c8_i32 = arith.constant 8 : i32
    %9 = arith.muli %8, %c8_i32 : i32
    %10 = vector.broadcast %9 : i32 to vector<8x16xi32>
    %11 = arith.addi %10, %5 : vector<8x16xi32>
    %c8_i32_4 = arith.constant 8 : i32
    %12 = vector.broadcast %c8_i32_4 : i32 to vector<8x16xi32>
    %13 = arith.cmpi slt, %11, %12 : vector<8x16xi32>
    %14 = vector.broadcast %4 : vector<8x1xi32> to vector<8x16xi32>
    %15 = arith.cmpi eq, %6, %14 : vector<8x16xi32>
    %16 = arith.andi %13, %15 : vector<8x16xi1>
    %cst = arith.constant 0.000000e+00 : f32
    %17 = vector.broadcast %cst : f32 to vector<8x16xf32>
    %18 = arith.select %16, %3, %17 : vector<8x16xi1>, vector<8x16xf32>
    %c0_5 = arith.constant 0 : index
    %c0_6 = arith.constant 0 : index
    %c0_7 = arith.constant 0 : index
    %19 = vector.load %arg4[%c0_5, %c0_6, %c0_7] : memref<1x8x128xf32, #tpu.memory_space<vmem>>, vector<1x8x128xf32>
    %20 = vector.shape_cast %18 : vector<8x16xf32> to vector<1x8x16xf32>
    %cst_8 = arith.constant dense<0.000000e+00> : vector<1xf32>
    %21 = vector.multi_reduction <add>, %20, %cst_8 [1, 2] : vector<1x8x16xf32> to vector<1xf32>
    %22 = vector.shape_cast %21 : vector<1xf32> to vector<1x1x1xf32>
    %23 = vector.extract %22[0, 0, 0] : f32 from vector<1x1x1xf32>
    %24 = vector.broadcast %23 : f32 to vector<1x8x128xf32>
    %25 = arith.addf %19, %24 : vector<1x8x128xf32>
    %c0_9 = arith.constant 0 : index
    %c0_10 = arith.constant 0 : index
    %c0_11 = arith.constant 0 : index
    %26 = vector.load %arg4[%c0_9, %c0_10, %c0_11] : memref<1x8x128xf32, #tpu.memory_space<vmem>>, vector<1x8x128xf32>
    tpu.vector_store %arg4[%c0_9, %c0_10, %c0_11], %25 {strides = array<i32>} : memref<1x8x128xf32, #tpu.memory_space<vmem>>, vector<1x8x128xf32>,
    return
  }
  func.func @transform_0(%arg0: i32, %arg1: i32) -> (i32, i32) {
    %c1_i32 = arith.constant 1 : i32
    %0 = arith.muli %arg0, %c1_i32 : i32
    %1 = arith.addi %0, %arg1 : i32
    %c0_i32 = arith.constant 0 : i32
    %2 = arith.minsi %1, %c0_i32 : i32
    %c0_i32_0 = arith.constant 0 : i32
    %c0_i32_1 = arith.constant 0 : i32
    return %2, %c0_i32_0 : i32, i32
  }
  func.func @transform_1(%arg0: i32, %arg1: i32) -> (i32, i32) {
    %c1_i32 = arith.constant 1 : i32
    %0 = arith.muli %arg0, %c1_i32 : i32
    %1 = arith.addi %0, %arg1 : i32
    %c0_i32 = arith.constant 0 : i32
    %2 = arith.minsi %1, %c0_i32 : i32
    %c0_i32_0 = arith.constant 0 : i32
    %c0_i32_1 = arith.constant 0 : i32
    return %2, %c0_i32_0 : i32, i32
  }
  func.func @transform_2(%arg0: i32, %arg1: i32) -> (i32, i32, i32) {
    %c0_i32 = arith.constant 0 : i32
    %c0_i32_0 = arith.constant 0 : i32
    %c0_i32_1 = arith.constant 0 : i32
    return %arg0, %c0_i32, %c0_i32_0 : i32, i32, i32
  }
}

</mosaic_0001>

<llo_original>
// kernel: tpu_custom_call.1
$region0: #{tpu_custom_call.1}
  #allocation0 [shape = 'u32[]', space=smem, size = 0x4, offset = 0x4, fixed_abs, tag = 'smem constant byte address 0x4 - core index']
  #allocation1 [shape = 'u32[72,128]{1,0:T(1,128)}', space=vmem, size = 0x9000, scoped, tag = 'internal scratch']
  %s0 = inlined_call_operand.vmem [shape: f32[8,16], index: 0, kind: input, shape index: {}]
  %s1 = inlined_call_operand.vmem [shape: s32[8,1], index: 1, kind: input, shape index: {}]
  %s2 = inlined_call_operand.hbm [shape: f32[1,8,128], index: 2, kind: output, shape index: {}]
  %s3 = sld [smem:[#allocation0]]
  $region22: #{tpu_custom_call.1} parent=0
    _
  %s5 = ssub.s32 1, %s3
  %s6 = scalar_select 0, %s5, %s3
  $region1: #{tpu_custom_call.1} parent=0
    #allocation2 [shape = 'u8[4096]{0}', space=vmem, size = 0x1000, scoped, tag = 'output window, operand 0, single buffered']
    #allocation3 [shape = 's32[1]{0}', space=sflag, size = 0x4, scoped, tag = 'scoped memory for tpu_custom_call.1']
    %7 = vsyncpa [#allocation3], 0
    // Predicated region
    $region2: #{tpu_custom_call.1} parent=1 // pred_check
      _
    $region3: #{tpu_custom_call.1} parent=1 // pred_check_branch
      %9 = sbr.rel (0) target = $region5
    $region4: #{tpu_custom_call.1} parent=1 // pred_region
      %s10 = sadd.s32 0, 0
      %p11 = scmp.lt.s32.totalorder %s10, 0
      %s12 = scalar_select %p11, %s10, 0
      %p13 = scmp.lt.s32.totalorder %s12, 0
      %s14 = scalar_select %p13, %s12, 0
      %s15 = smul.addr %s14, 8
      %s16 = scalar_lea.vmem %s0, %s15
      %s17 = sadd.s32 0, 0
      %p18 = scmp.lt.s32.totalorder %s17, 0
      %s19 = scalar_select %p18, %s17, 0
    $region5: #{tpu_custom_call.1} parent=1 // pred_fallthru
      _
    // Predicated region
    $region6: #{tpu_custom_call.1} parent=1 // pred_check
      _
    $region7: #{tpu_custom_call.1} parent=1 // pred_check_branch
      %21 = sbr.rel (0) target = $region9
    $region8: #{tpu_custom_call.1} parent=1 // pred_region
      %s22 = sadd.s32 0, 0
      %p23 = scmp.lt.s32.totalorder %s22, 0
      %s24 = scalar_select %p23, %s22, 0
      %p25 = scmp.lt.s32.totalorder %s24, 0
      %s26 = scalar_select %p25, %s24, 0
      %s27 = smul.addr %s26, 8
      %s28 = scalar_lea.vmem %s1, %s27
      %s29 = sadd.s32 0, 0
      %p30 = scmp.lt.s32.totalorder %s29, 0
      %s31 = scalar_select %p30, %s29, 0
    $region9: #{tpu_custom_call.1} parent=1 // pred_fallthru
      _
    %s32 = sadd.s32 0, 0
    %p33 = scmp.lt.s32.totalorder %s32, 0
    %s34 = scalar_select %p33, %s32, 0
    %p35 = scmp.lt.s32.totalorder %s34, 0
    %s36 = scalar_select %p35, %s34, 0
    %s37 = smul.addr %s36, 8
    %s38 = scalar_lea.vmem %s0, %s37
    %s39 = sadd.s32 0, 0
    %p40 = scmp.lt.s32.totalorder %s39, 0
    %s41 = scalar_select %p40, %s39, 0
    %p42 = scmp.lt.s32.totalorder %s41, 0
    %s43 = scalar_select %p42, %s41, 0
    %s44 = smul.addr %s43, 8
    %s45 = scalar_lea.vmem %s1, %s44
    %s46 = sadd.s32 0, 0
    %p47 = scmp.lt.s32.totalorder %s46, 0
    %s48 = scalar_select %p47, %s46, 0
    %p49 = scmp.lt.s32.totalorder %s48, 0
    %s50 = scalar_select %p49, %s48, 0
    %s51 = smul.addr %s50, 8
    %s52 = scalar_lea.vmem %s0, %s51
    %s53 = sadd.s32 0, 0
    %p54 = scmp.lt.s32.totalorder %s53, 0
    %s55 = scalar_select %p54, %s53, 0
    %s56 = sadd.s32 0, 0
    %p57 = scmp.lt.s32.totalorder %s56, 0
    %s58 = scalar_select %p57, %s56, 0
    %p59 = scmp.lt.s32.totalorder %s58, 0
    %s60 = scalar_select %p59, %s58, 0
    %s61 = smul.addr %s60, 8
    %s62 = scalar_lea.vmem %s1, %s61
    %s63 = sadd.s32 0, 0
    %p64 = scmp.lt.s32.totalorder %s63, 0
    %s65 = scalar_select %p64, %s63, 0
    %p66 = scmp.eq.s32.totalorder 0, 0
    // Predicated region
    $region10: #{tpu_custom_call.1} parent=1 // pred_check
      %p67 = pneg %p66
    $region11: #{tpu_custom_call.1} parent=1 // pred_check_branch
      %69 = sbr.rel (%p67) target = $region13
    $region12: #{tpu_custom_call.1} parent=1 // pred_region
      %70 = vst [vmem:[#allocation2] sm:$0xff] 0.0
    $region13: #{tpu_custom_call.1} parent=1 // pred_fallthru
      _
    %v71 = vld [vmem:[%s52] sm:$0xff]
    %v72 = vld [vmem:[%s62] sm:$0xff]
    %v73 = vlaneseq
    %v74 = vshrl.u32 %v73, 7
    %v75 = vlaneseq
    %v76 = vand.u32 %v75, 127
    %s77 = sadd.s32 0, 0
    %s78 = smul.u32 %s77, 8
    %v79 = vstv %s78
    %v80 = vadd.s32 %v79, %v74
    %vm81 = vcmp.lt.s32.totalorder %v80, 8
    %82 = vset.pattern.permute.xlu0 0
    %83 = vperm.xlu0 %82, %v72
    %v84 = vpop.permute.xlu0 %83
    %vm85 = vcmp.eq.s32.totalorder %v76, %v84
    %vm86 = vmand %vm81, %vm85
    %v87 = vsel %vm86, %v71, 0.0
    %v88 = vld [vmem:[#allocation2] sm:$0xff]
    %vm89 = vcmask 130048
    %v90 = vsel %vm89, %v87, 0.0
    %91 = vadd.xlane.f32.xlu0 %v90
    %v92 = vpop.xlane.xlu0 %91
    %v93 = vrot.slane %v92, 4
    %v94 = vadd.f32 %v92, %v93
    %v95 = vrot.slane %v94, 2
    %v96 = vadd.f32 %v94, %v95
    %v97 = vrot.slane %v96, 1
    %v98 = vadd.f32 %v96, %v97
    %s99 = vtos %v98
    %v100 = vstv %s99
    %v101 = vadd.f32 %v88, %v100
    %102 = vst [vmem:[#allocation2] sm:$0xff] %v101
    // Predicated region
    $region14: #{tpu_custom_call.1} parent=1 // pred_check
      _
    $region15: #{tpu_custom_call.1} parent=1 // pred_check_branch
      %104 = sbr.rel (0) target = $region17
    $region16: #{tpu_custom_call.1} parent=1 // pred_region
      %106 = vsyncadd [#allocation3], 0
      %s108 = sshll.u32 [#allocation2], 4
      %s109 = int_to_ptr.vmem [resolvable:$true] %s108
      %s110 = sshll.u32 %s2, 4
      %s111 = int_to_ptr.hbm [resolvable:$true] %s110
      %113 = dma.vmem_to_hbm [thread:$0]  %s109, 128, %s111, [#allocation3]
    $region17: #{tpu_custom_call.1} parent=1 // pred_fallthru
      _
    // Predicated region
    $region18: #{tpu_custom_call.1} parent=1 // pred_check
      _
    $region19: #{tpu_custom_call.1} parent=1 // pred_check_branch
      %115 = sbr.rel (0) target = $region21
    $region20: #{tpu_custom_call.1} parent=1 // pred_region
      %117 = dma.done [#allocation3], 128
    $region21: #{tpu_custom_call.1} parent=1 // pred_fallthru
      _
    %118 = vsyncpa [#allocation3], 1

</llo_original>
